<compile_context>
chip_gen: v7x
topology: tpu7x:2x2x1
jax: 0.10.0
libtpu: 0.0.40
codegen_flags: <defaults>
</compile_context>

<pallas_src>
import functools

import jax
import jax.numpy as jnp
from jax.experimental import pallas as pl
from jax.experimental.pallas import tpu as pltpu


def _round_up(x, m):
    return (x + m - 1) // m * m


# ---------------------------------------------------------------------------
# Tiled linear (matmul + bias) kernel: grid = (M/tm, Nout/tn, K/tk)
# ---------------------------------------------------------------------------
def _linear_kernel(x_ref, w_ref, b_ref, o_ref, acc_ref, *, compute_dtype):
    k = pl.program_id(2)

    @pl.when(k == 0)
    def _():
        acc_ref[...] = jnp.zeros_like(acc_ref)

    acc_ref[...] += jnp.dot(
        x_ref[...].astype(compute_dtype),
        w_ref[...].astype(compute_dtype),
        preferred_element_type=jnp.float32,
    )

    @pl.when(k == pl.num_programs(2) - 1)
    def _():
        o_ref[...] = (acc_ref[...] + b_ref[...].astype(jnp.float32)).astype(o_ref.dtype)


def linear_pallas(x, w, b=None, *, tm=512, tn=256, tk=256,
                  compute_dtype=jnp.bfloat16):
    """x: [M, K], w: [K, Nout], b: [Nout] or None -> [M, Nout] in x.dtype."""
    M, K = x.shape
    Kw, Nout = w.shape
    assert K == Kw
    if b is None:
        b = jnp.zeros((Nout,), x.dtype)

    # Clamp tiles to the (aligned) problem size; keep (8, 128) compatibility.
    tm = min(tm, _round_up(M, 8))
    tn = min(tn, _round_up(Nout, 128))
    tk = min(tk, _round_up(K, 128))
    Mp, Kp, Np = _round_up(M, tm), _round_up(K, tk), _round_up(Nout, tn)

    xp = jnp.pad(x, ((0, Mp - M), (0, Kp - K))) if (Mp, Kp) != (M, K) else x
    wp = jnp.pad(w, ((0, Kp - K), (0, Np - Nout))) if (Kp, Np) != (K, Nout) else w
    bp = (jnp.pad(b, (0, Np - Nout)) if Np != Nout else b).reshape(1, Np)

    grid = (Mp // tm, Np // tn, Kp // tk)
    out = pl.pallas_call(
        functools.partial(_linear_kernel, compute_dtype=compute_dtype),
        out_shape=jax.ShapeDtypeStruct((Mp, Np), x.dtype),
        grid_spec=pltpu.PrefetchScalarGridSpec(
            num_scalar_prefetch=0,
            grid=grid,
            in_specs=[
                pl.BlockSpec((tm, tk), lambda i, j, k: (i, k)),
                pl.BlockSpec((tk, tn), lambda i, j, k: (k, j)),
                pl.BlockSpec((1, tn), lambda i, j, k: (0, j)),
            ],
            out_specs=pl.BlockSpec((tm, tn), lambda i, j, k: (i, j)),
            scratch_shapes=[pltpu.VMEM((tm, tn), jnp.float32)],
        ),
        compiler_params=pltpu.CompilerParams(
            dimension_semantics=("parallel", "parallel", "arbitrary"),
            vmem_limit_bytes=48 * 1024 * 1024,
        ),
    )(xp, wp, bp)
    if (Mp, Np) != (M, Nout):
        out = out[:M, :Nout]
    return out


# ---------------------------------------------------------------------------
# Attention core: one batch (all H heads) per grid step.
# Reads q/k/v straight out of the [Npad, 3C] qkv slab, writes lane-dense
# [Npad, C].
# ---------------------------------------------------------------------------
def _attn_kernel(qkv_ref, o_ref, *, num_heads, head_dim, seq_len, scale,
                 compute_dtype):
    C = num_heads * head_dim
    qkv = qkv_ref[0]                                   # [Npad, 3C]
    n_pad = qkv.shape[0]

    key_mask = None
    if n_pad != seq_len:                               # static (trace-time) check
        col = jax.lax.broadcasted_iota(jnp.int32, (n_pad, n_pad), 1)
        key_mask = col < seq_len

    outs = []
    for h in range(num_heads):                         # small static unroll
        lo = h * head_dim
        q = (qkv[:, lo:lo + head_dim] * scale).astype(compute_dtype)
        k = qkv[:, C + lo:C + lo + head_dim].astype(compute_dtype)
        v = qkv[:, 2 * C + lo:2 * C + lo + head_dim].astype(compute_dtype)

        # q @ k^T in MXU-native transposed-RHS form (no explicit k transpose).
        s = jax.lax.dot_general(
            q, k,
            dimension_numbers=(((1,), (1,)), ((), ())),
            preferred_element_type=jnp.float32)        # [Npad, Npad] f32
        if key_mask is not None:
            s = jnp.where(key_mask, s, jnp.float32(-1e30))   # finite -> no NaNs

        m = jnp.max(s, axis=-1, keepdims=True)
        p = jnp.exp(s - m)
        inv = pl.reciprocal(jnp.sum(p, axis=-1, keepdims=True), approx=True)
        acc = jnp.dot(p.astype(compute_dtype), v,
                      preferred_element_type=jnp.float32)     # [Npad, D] f32
        outs.append(acc * inv)     # normalize the [N,D] output, not the [N,N] probs

    # One lane-dense [Npad, C] store (avoids per-head masked partial stores).
    o_ref[0] = jnp.concatenate(outs, axis=-1).astype(o_ref.dtype)


def attention_core_pallas(qkv, num_heads, scale, *, seq_len,
                          compute_dtype=jnp.bfloat16):
    """qkv: [B, Npad, 3C] with columns ordered [q | k | v], each head-blocked.
    Returns [B, Npad, C] with heads already merged (no transpose after)."""
    B, Npad, threeC = qkv.shape
    C = threeC // 3
    D = C // num_heads

    return pl.pallas_call(
        functools.partial(_attn_kernel, num_heads=num_heads, head_dim=D,
                          seq_len=seq_len, scale=scale,
                          compute_dtype=compute_dtype),
        out_shape=jax.ShapeDtypeStruct((B, Npad, C), qkv.dtype),
        grid=(B,),
        in_specs=[pl.BlockSpec((1, Npad, threeC), lambda b: (b, 0, 0))],
        out_specs=pl.BlockSpec((1, Npad, C), lambda b: (b, 0, 0)),
        compiler_params=pltpu.CompilerParams(
            dimension_semantics=("parallel",),
            vmem_limit_bytes=48 * 1024 * 1024,
        ),
    )(qkv)


# ---------------------------------------------------------------------------
# Full module forward
# ---------------------------------------------------------------------------
def attention_forward(x, w_qkv, w_proj, b_proj, num_heads, *, qk_scale=None,
                      compute_dtype=jnp.bfloat16):
    B, N, C = x.shape
    D = C // num_heads
    scale = qk_scale if qk_scale is not None else D ** (-0.5)

    # Pad the sequence ONCE so every downstream kernel sees aligned shapes.
    Npad = _round_up(N, 8)
    if Npad != N:
        x = jnp.pad(x, ((0, 0), (0, Npad - N), (0, 0)))

    # 1) QKV projection (qkv_bias=False). Columns are already in the
    #    [q | k | v] x [head, head_dim] order the attention kernel consumes.
    qkv = linear_pallas(x.reshape(B * Npad, C), w_qkv, None,
                        compute_dtype=compute_dtype)          # [B*Npad, 3C]
    qkv = qkv.reshape(B, Npad, 3 * C)                         # free reshape

    # 2) Attention core -> directly [B, Npad, C] (padded keys masked inside).
    o = attention_core_pallas(qkv, num_heads, scale, seq_len=N,
                              compute_dtype=compute_dtype)

    # 3) Output projection + bias. attn_drop/proj_drop (p=0.0) are identity.
    out = linear_pallas(o.reshape(B * Npad, C), w_proj, b_proj,
                        compute_dtype=compute_dtype)          # [B*Npad, C]
    out = out.reshape(B, Npad, C)
    if Npad != N:
        out = out[:, :N, :]
    return out


# Plain-JAX reference (same bf16-operand / f32-accumulation recipe).
def attention_reference(x, w_qkv, w_proj, b_proj, num_heads,
                        compute_dtype=jnp.bfloat16):
    B, N, C = x.shape
    H = num_heads
    D = C // H
    scale = D ** (-0.5)
    cd = compute_dtype

    def mm(a, b):
        return jnp.dot(a.astype(cd), b.astype(cd),
                       preferred_element_type=jnp.float32)

    qkv = mm(x.reshape(B * N, C), w_qkv)
    qkv = qkv.reshape(B, N, 3, H, D).transpose(2, 0, 3, 1, 4)
    q, k, v = qkv[0], qkv[1], qkv[2]
    s = jnp.einsum("bhnd,bhmd->bhnm", (q * scale).astype(cd), k.astype(cd),
                   preferred_element_type=jnp.float32)
    p = jax.nn.softmax(s, axis=-1)
    o = jnp.einsum("bhnm,bhmd->bhnd", p.astype(cd), v.astype(cd),
                   preferred_element_type=jnp.float32)
    o = o.transpose(0, 2, 1, 3).reshape(B * N, C)
    return (mm(o, w_proj) + b_proj).reshape(B, N, C)


if __name__ == "__main__":
    num_heads = 4

    key = jax.random.PRNGKey(0)
    kx, kqkv, kproj, kb = jax.random.split(key, 4)

    def run_case(B, N, C):
        x = jax.random.normal(kx, (B, N, C), dtype=jnp.float32)
        # torch Linear stores weight as [out, in]; we keep the [in, out] transpose.
        w_qkv = jax.random.normal(kqkv, (C, 3 * C), dtype=jnp.float32) * 0.05
        w_proj = jax.random.normal(kproj, (C, C), dtype=jnp.float32) * 0.05
        b_proj = jax.random.normal(kb, (C,), dtype=jnp.float32) * 0.05

        out = attention_forward(x, w_qkv, w_proj, b_proj, num_heads)
        out = jax.block_until_ready(out)
        ref = attention_reference(x, w_qkv, w_proj, b_proj, num_heads)
        assert out.shape == (B, N, C)
        err = jnp.max(jnp.abs(out - ref))
        assert jnp.allclose(out, ref, atol=2e-2, rtol=2e-2), (
            f"mismatch vs reference at B={B} N={N} C={C}: max abs err {err}")

    run_case(2, 16, 64)   # sublane-aligned sequence length
    run_case(2, 12, 64)   # unaligned N exercises the pad + key-mask path

    print("KERNEL_OK")
</pallas_src>

<mosaic_0001>
module attributes {stable_mosaic.version = 11 : i64} {
  func.func @_linear_kernel(%arg0: i32, %arg1: i32, %arg2: i32, %arg3: memref<32x128xf32, #tpu.memory_space<vmem>>, %arg4: memref<128x256xf32, #tpu.memory_space<vmem>>, %arg5: memref<1x256xf32, #tpu.memory_space<vmem>>, %arg6: memref<32x256xf32, #tpu.memory_space<vmem>>, %arg7: memref<32x256xf32, #tpu.memory_space<vmem>>) attributes {dimension_semantics = [#tpu.dimension_semantics<parallel>, #tpu.dimension_semantics<parallel>, #tpu.dimension_semantics<arbitrary>], iteration_bounds = array<i64: 1, 1, 1>, scalar_prefetch = 0 : i64, scratch_operands = 1 : i64, tpu.core_type = #tpu.core_type<tc>, window_params = [{transform_indices = @transform_0, window_bounds = array<i64: 32, 128>}, {transform_indices = @transform_1, window_bounds = array<i64: 128, 256>}, {transform_indices = @transform_2, window_bounds = array<i64: 1, 256>}, {transform_indices = @transform_3, window_bounds = array<i64: 32, 256>}]} {
    %c0_i32 = arith.constant 0 : i32
    %0 = arith.cmpi eq, %arg2, %c0_i32 : i32
    %1 = arith.extui %0 : i1 to i32
    %c0_i32_0 = arith.constant 0 : i32
    %2 = arith.cmpi ne, %1, %c0_i32_0 : i32
    scf.if %2 {
      %cst_10 = arith.constant 0.000000e+00 : f32
      %14 = vector.broadcast %cst_10 : f32 to vector<32x256xf32>
      %c0_11 = arith.constant 0 : index
      %c0_12 = arith.constant 0 : index
      %15 = vector.load %arg7[%c0_11, %c0_12] : memref<32x256xf32, #tpu.memory_space<vmem>>, vector<32x256xf32>
      tpu.vector_store %arg7[%c0_11, %c0_12], %14 {strides = array<i32>} : memref<32x256xf32, #tpu.memory_space<vmem>>, vector<32x256xf32>,
    } else {
    }
    %c0 = arith.constant 0 : index
    %c0_1 = arith.constant 0 : index
    %3 = vector.load %arg7[%c0, %c0_1] : memref<32x256xf32, #tpu.memory_space<vmem>>, vector<32x256xf32>
    %c0_2 = arith.constant 0 : index
    %c0_3 = arith.constant 0 : index
    %4 = vector.load %arg3[%c0_2, %c0_3] : memref<32x128xf32, #tpu.memory_space<vmem>>, vector<32x128xf32>
    %5 = arith.truncf %4 : vector<32x128xf32> to vector<32x128xbf16>
    %c0_4 = arith.constant 0 : index
    %c0_5 = arith.constant 0 : index
    %6 = vector.load %arg4[%c0_4, %c0_5] : memref<128x256xf32, #tpu.memory_space<vmem>>, vector<128x256xf32>
    %7 = arith.truncf %6 : vector<128x256xf32> to vector<128x256xbf16>
    %cst = arith.constant dense<0.000000e+00> : vector<32x256xf32>
    %8 = tpu.matmul %5, %7, %cst {dimension_numbers = #tpu.dot_dimension_numbers<[1], [0], [0], [1], [0, 0, 1, 1], [], []>} : vector<32x128xbf16>, vector<128x256xbf16>, vector<32x256xf32> -> vector<32x256xf32>
    %9 = arith.addf %3, %8 : vector<32x256xf32>
    %c0_6 = arith.constant 0 : index
    %c0_7 = arith.constant 0 : index
    %10 = vector.load %arg7[%c0_6, %c0_7] : memref<32x256xf32, #tpu.memory_space<vmem>>, vector<32x256xf32>
    tpu.vector_store %arg7[%c0_6, %c0_7], %9 {strides = array<i32>} : memref<32x256xf32, #tpu.memory_space<vmem>>, vector<32x256xf32>,
    %c0_i32_8 = arith.constant 0 : i32
    %11 = arith.cmpi eq, %arg2, %c0_i32_8 : i32
    %12 = arith.extui %11 : i1 to i32
    %c0_i32_9 = arith.constant 0 : i32
    %13 = arith.cmpi ne, %12, %c0_i32_9 : i32
    scf.if %13 {
      %c0_10 = arith.constant 0 : index
      %c0_11 = arith.constant 0 : index
      %14 = vector.load %arg7[%c0_10, %c0_11] : memref<32x256xf32, #tpu.memory_space<vmem>>, vector<32x256xf32>
      %c0_12 = arith.constant 0 : index
      %c0_13 = arith.constant 0 : index
      %15 = vector.load %arg5[%c0_12, %c0_13] : memref<1x256xf32, #tpu.memory_space<vmem>>, vector<1x256xf32>
      %16 = vector.broadcast %15 : vector<1x256xf32> to vector<32x256xf32>
      %17 = arith.addf %14, %16 : vector<32x256xf32>
      %c0_14 = arith.constant 0 : index
      %c0_15 = arith.constant 0 : index
      %18 = vector.load %arg6[%c0_14, %c0_15] : memref<32x256xf32, #tpu.memory_space<vmem>>, vector<32x256xf32>
      tpu.vector_store %arg6[%c0_14, %c0_15], %17 {strides = array<i32>} : memref<32x256xf32, #tpu.memory_space<vmem>>, vector<32x256xf32>,
    } else {
    }
    return
  }
  func.func @transform_0(%arg0: i32, %arg1: i32, %arg2: i32) -> (i32, i32) {
    %c0_i32 = arith.constant 0 : i32
    return %arg0, %arg2 : i32, i32
  }
  func.func @transform_1(%arg0: i32, %arg1: i32, %arg2: i32) -> (i32, i32) {
    %c0_i32 = arith.constant 0 : i32
    return %arg2, %arg1 : i32, i32
  }
  func.func @transform_2(%arg0: i32, %arg1: i32, %arg2: i32) -> (i32, i32) {
    %c0_i32 = arith.constant 0 : i32
    %c0_i32_0 = arith.constant 0 : i32
    return %c0_i32, %arg1 : i32, i32
  }
  func.func @transform_3(%arg0: i32, %arg1: i32, %arg2: i32) -> (i32, i32) {
    %c0_i32 = arith.constant 0 : i32
    return %arg0, %arg1 : i32, i32
  }
}

</mosaic_0001>

<llo_original>
// kernel: tpu_custom_call.1
$region0: #{tpu_custom_call.1}
  #allocation0 [shape = 'u32[]', space=smem, size = 0x4, offset = 0x4, fixed_abs, tag = 'smem constant byte address 0x4 - core index']
  #allocation1 [shape = 'u32[144,128]{1,0:T(1,128)}', space=vmem, size = 0x12000, scoped, tag = 'internal scratch']
  #allocation2 [shape = 'f32[32,256]{1,0:T(8,128)}', space=vmem, size = 0x8000, scoped, tag = 'scratch operand']
  %s0 = inlined_call_operand.hbm [shape: f32[32,128], index: 0, kind: input, shape index: {}]
  %s1 = inlined_call_operand.hbm [shape: f32[128,256], index: 1, kind: input, shape index: {}]
  %s2 = inlined_call_operand.vmem [shape: f32[1,256], index: 2, kind: input, shape index: {}]
  %s3 = inlined_call_operand.hbm [shape: f32[32,256], index: 3, kind: output, shape index: {}]
  %s4 = sld [smem:[#allocation0]]
  $region38: #{tpu_custom_call.1} parent=0
    _
  %s6 = ssub.s32 1, %s4
  %s7 = scalar_select 0, %s6, %s4
  $region1: #{tpu_custom_call.1} parent=0
    #allocation3 [shape = 'u8[16384]{0}', space=vmem, size = 0x4000, scoped, tag = 'input window, operand 0, single buffered']
    #allocation4 [shape = 's32[1]{0}', space=sflag, size = 0x4, scoped, tag = 'scoped memory for tpu_custom_call.1']
    #allocation5 [shape = 's32[1]{0}', space=sflag, size = 0x4, scoped, tag = 'scoped memory for tpu_custom_call.1']
    #allocation6 [shape = 'u8[131072]{0}', space=vmem, size = 0x20000, scoped, tag = 'input window, operand 1, single buffered']
    #allocation7 [shape = 's32[1]{0}', space=sflag, size = 0x4, scoped, tag = 'scoped memory for tpu_custom_call.1']
    #allocation8 [shape = 'u8[32768]{0}', space=vmem, size = 0x8000, scoped, tag = 'output window, operand 0, single buffered']
    %8 = vsyncpa [#allocation4], 0
    %9 = vsyncpa [#allocation7], 0
    %10 = vsyncpa [#allocation5], 0
    // Predicated region
    $region2: #{tpu_custom_call.1} parent=1 // pred_check
      _
    $region3: #{tpu_custom_call.1} parent=1 // pred_check_branch
      %12 = sbr.rel (0) target = $region5
    $region4: #{tpu_custom_call.1} parent=1 // pred_region
      %s14 = ssub.s32 512, 512
      %15 = vsyncadd [#allocation4], %s14
      %s16 = sshll.u32 [#allocation3], 4
      %s17 = int_to_ptr.vmem [resolvable:$true] %s16
      %22 = dma.hbm_to_vmem [thread:$0]  %s0, 512, %s17, [#allocation4], 128, 128, 8
    $region5: #{tpu_custom_call.1} parent=1 // pred_fallthru
      _
    // Predicated region
    $region6: #{tpu_custom_call.1} parent=1 // pred_check
      _
    $region7: #{tpu_custom_call.1} parent=1 // pred_check_branch
      %24 = sbr.rel (0) target = $region9
    $region8: #{tpu_custom_call.1} parent=1 // pred_region
      %s26 = ssub.s32 4096, 4096
      %27 = vsyncadd [#allocation7], %s26
      %s28 = sshll.u32 [#allocation6], 4
      %s29 = int_to_ptr.vmem [resolvable:$true] %s28
      %34 = dma.hbm_to_vmem [thread:$0]  %s1, 4096, %s29, [#allocation7], 256, 256, 16
    $region9: #{tpu_custom_call.1} parent=1 // pred_fallthru
      _
    // Predicated region
    $region10: #{tpu_custom_call.1} parent=1 // pred_check
      _
    $region11: #{tpu_custom_call.1} parent=1 // pred_check_branch
      %36 = sbr.rel (0) target = $region13
    $region12: #{tpu_custom_call.1} parent=1 // pred_region
      _
    $region13: #{tpu_custom_call.1} parent=1 // pred_fallthru
      _
    // Predicated region
    $region14: #{tpu_custom_call.1} parent=1 // pred_check
      _
    $region15: #{tpu_custom_call.1} parent=1 // pred_check_branch
      %38 = sbr.rel (0) target = $region17
    $region16: #{tpu_custom_call.1} parent=1 // pred_region
      %39 = dma.done [#allocation4], 512
    $region17: #{tpu_custom_call.1} parent=1 // pred_fallthru
      _
    // Predicated region
    $region18: #{tpu_custom_call.1} parent=1 // pred_check
      _
    $region19: #{tpu_custom_call.1} parent=1 // pred_check_branch
      %41 = sbr.rel (0) target = $region21
    $region20: #{tpu_custom_call.1} parent=1 // pred_region
      %42 = dma.done [#allocation7], 4096
    $region21: #{tpu_custom_call.1} parent=1 // pred_fallthru
      _
    %p44 = scmp.eq.s32.totalorder 0, 0
    // Predicated region
    $region22: #{tpu_custom_call.1} parent=1 // pred_check
      %p45 = pneg %p44
    $region23: #{tpu_custom_call.1} parent=1 // pred_check_branch
      %47 = sbr.rel (%p45) target = $region25
    $region24: #{tpu_custom_call.1} parent=1 // pred_region
      %48 = vst [vmem:[#allocation2] sm:$0xff] 0.0
      %49 = vst [vmem:[#allocation2 + $0x8] sm:$0xff] 0.0
      %50 = vst [vmem:[#allocation2 + $0x10] sm:$0xff] 0.0
      %51 = vst [vmem:[#allocation2 + $0x18] sm:$0xff] 0.0
      %52 = vst [vmem:[#allocation2 + $0x20] sm:$0xff] 0.0
      %53 = vst [vmem:[#allocation2 + $0x28] sm:$0xff] 0.0
      %54 = vst [vmem:[#allocation2 + $0x30] sm:$0xff] 0.0
      %55 = vst [vmem:[#allocation2 + $0x38] sm:$0xff] 0.0
    $region25: #{tpu_custom_call.1} parent=1 // pred_fallthru
      _
    %v56 = vld [vmem:[#allocation2] sm:$0xff]
    %v57 = vld [vmem:[#allocation2 + $0x8] sm:$0xff]
    %v58 = vld [vmem:[#allocation2 + $0x10] sm:$0xff]
    %v59 = vld [vmem:[#allocation2 + $0x18] sm:$0xff]
    %v60 = vld [vmem:[#allocation2 + $0x20] sm:$0xff]
    %v61 = vld [vmem:[#allocation2 + $0x28] sm:$0xff]
    %v62 = vld [vmem:[#allocation2 + $0x30] sm:$0xff]
    %v63 = vld [vmem:[#allocation2 + $0x38] sm:$0xff]
    %v64 = vld [vmem:[#allocation3] sm:$0xff]
    %v65 = vld [vmem:[#allocation3 + $0x8] sm:$0xff]
    %v66 = vld [vmem:[#allocation3 + $0x10] sm:$0xff]
    %v67 = vld [vmem:[#allocation3 + $0x18] sm:$0xff]
    %v68 = vpack.c.bf16 %v65, %v64
    %v69 = vpack.c.bf16 %v67, %v66
    %v70 = vld [vmem:[#allocation6] sm:$0xff]
    %v71 = vld [vmem:[#allocation6 + $0x8] sm:$0xff]
    %v72 = vld [vmem:[#allocation6 + $0x10] sm:$0xff]
    %v73 = vld [vmem:[#allocation6 + $0x18] sm:$0xff]
    %v74 = vld [vmem:[#allocation6 + $0x20] sm:$0xff]
    %v75 = vld [vmem:[#allocation6 + $0x28] sm:$0xff]
    %v76 = vld [vmem:[#allocation6 + $0x30] sm:$0xff]
    %v77 = vld [vmem:[#allocation6 + $0x38] sm:$0xff]
    %v78 = vld [vmem:[#allocation6 + $0x40] sm:$0xff]
    %v79 = vld [vmem:[#allocation6 + $0x48] sm:$0xff]
    %v80 = vld [vmem:[#allocation6 + $0x50] sm:$0xff]
    %v81 = vld [vmem:[#allocation6 + $0x58] sm:$0xff]
    %v82 = vld [vmem:[#allocation6 + $0x60] sm:$0xff]
    %v83 = vld [vmem:[#allocation6 + $0x68] sm:$0xff]
    %v84 = vld [vmem:[#allocation6 + $0x70] sm:$0xff]
    %v85 = vld [vmem:[#allocation6 + $0x78] sm:$0xff]
    %v86 = vld [vmem:[#allocation6 + $0x80] sm:$0xff]
    %v87 = vld [vmem:[#allocation6 + $0x88] sm:$0xff]
    %v88 = vld [vmem:[#allocation6 + $0x90] sm:$0xff]
    %v89 = vld [vmem:[#allocation6 + $0x98] sm:$0xff]
    %v90 = vld [vmem:[#allocation6 + $0xa0] sm:$0xff]
    %v91 = vld [vmem:[#allocation6 + $0xa8] sm:$0xff]
    %v92 = vld [vmem:[#allocation6 + $0xb0] sm:$0xff]
    %v93 = vld [vmem:[#allocation6 + $0xb8] sm:$0xff]
    %v94 = vld [vmem:[#allocation6 + $0xc0] sm:$0xff]
    %v95 = vld [vmem:[#allocation6 + $0xc8] sm:$0xff]
    %v96 = vld [vmem:[#allocation6 + $0xd0] sm:$0xff]
    %v97 = vld [vmem:[#allocation6 + $0xd8] sm:$0xff]
    %v98 = vld [vmem:[#allocation6 + $0xe0] sm:$0xff]
    %v99 = vld [vmem:[#allocation6 + $0xe8] sm:$0xff]
    %v100 = vld [vmem:[#allocation6 + $0xf0] sm:$0xff]
    %v101 = vld [vmem:[#allocation6 + $0xf8] sm:$0xff]
    %v102 = vpack.c.bf16 %v72, %v70
    %v103 = vpack.c.bf16 %v73, %v71
    %v104 = vpack.c.bf16 %v76, %v74
    %v105 = vpack.c.bf16 %v77, %v75
    %v106 = vpack.c.bf16 %v80, %v78
    %v107 = vpack.c.bf16 %v81, %v79
    %v108 = vpack.c.bf16 %v84, %v82
    %v109 = vpack.c.bf16 %v85, %v83
    %v110 = vpack.c.bf16 %v88, %v86
    %v111 = vpack.c.bf16 %v89, %v87
    %v112 = vpack.c.bf16 %v92, %v90
    %v113 = vpack.c.bf16 %v93, %v91
    %v114 = vpack.c.bf16 %v96, %v94
    %v115 = vpack.c.bf16 %v97, %v95
    %v116 = vpack.c.bf16 %v100, %v98
    %v117 = vpack.c.bf16 %v101, %v99
    %118 = vmatprep.subr.bf16.mxu0 %v103
    %119 = vmatpush1.bf16.msra.mxu0 %v102
    %120 = vmatprep.subr.bf16.mxu0 %v105
    %121 = vmatpush1.bf16.msra.mxu0 %v104
    %122 = vmatprep.subr.bf16.mxu0 %v107
    %123 = vmatpush1.bf16.msra.mxu0 %v106
    %124 = vmatprep.subr.bf16.mxu0 %v109
    %125 = vmatpush1.bf16.msra.mxu0 %v108
    %126 = vmatprep.subr.bf16.mxu0 %v111
    %127 = vmatpush1.bf16.msra.mxu0 %v110
    %128 = vmatprep.subr.bf16.mxu0 %v113
    %129 = vmatpush1.bf16.msra.mxu0 %v112
    %130 = vmatprep.subr.bf16.mxu0 %v115
    %131 = vmatpush1.bf16.msra.mxu0 %v114
    %132 = vmatprep.subr.bf16.mxu0 %v117
    %133 = vmatpush1.bf16.msra.mxu0 %v116
    %134 = vmatprep.subr.bf16.mxu0 0
    %135 = vmatpush1.bf16.msra.mxu0 0
    %136 = vmatprep.subr.bf16.mxu0 0
    %137 = vmatpush1.bf16.msra.mxu0 0
    %138 = vmatprep.subr.bf16.mxu0 0
    %139 = vmatpush1.bf16.msra.mxu0 0
    %140 = vmatprep.subr.bf16.mxu0 0
    %141 = vmatpush1.bf16.msra.mxu0 0
    %142 = vmatprep.subr.bf16.mxu0 0
    %143 = vmatpush1.bf16.msra.mxu0 0
    %144 = vmatprep.subr.bf16.mxu0 0
    %145 = vmatpush1.bf16.msra.mxu0 0
    %146 = vmatprep.subr.bf16.mxu0 0
    %147 = vmatpush1.bf16.msra.mxu0 0
    %148 = vmatprep.subr.bf16.mxu0 0
    %149 = vmatpush1.bf16.msra.mxu0 0
    %150 = vmatprep.mubr.bf16.mxu0 0
    %151 = vmatmul.mubr.bf16.gmra.mrb[0].mxu0 %v68
    %v152 = vpop.f32.mrb[0].mxu0
    %v153 = vadd.f32 0.0, %v152
    %v154 = vpop.f32.mrb[0].mxu0
    %v155 = vadd.f32 0.0, %v154
    %v156 = vpop.f32.mrb[0].mxu0
    %v157 = vadd.f32 0.0, %v156
    %v158 = vpop.f32.mrb[0].mxu0
    %v159 = vadd.f32 0.0, %v158
    %160 = vmatprep.mubr.bf16.mxu0 0
    %161 = vmatmul.mubr.bf16.gmra.mrb[0].mxu0 %v69
    %v162 = vpop.f32.mrb[0].mxu0
    %v163 = vadd.f32 0.0, %v162
    %v164 = vpop.f32.mrb[0].mxu0
    %v165 = vadd.f32 0.0, %v164
    %v166 = vpop.f32.mrb[0].mxu0
    %v167 = vadd.f32 0.0, %v166
    %v168 = vpop.f32.mrb[0].mxu0
    %v169 = vadd.f32 0.0, %v168
    %170 = vdwg.mxu0
    %v171 = vadd.f32 %v56, %v153
    %v172 = vadd.f32 %v57, %v155
    %v173 = vadd.f32 %v58, %v157
    %v174 = vadd.f32 %v59, %v159
    %v175 = vadd.f32 %v60, %v163
    %v176 = vadd.f32 %v61, %v165
    %v177 = vadd.f32 %v62, %v167
    %v178 = vadd.f32 %v63, %v169
    %179 = vst [vmem:[#allocation2] sm:$0xff] %v171
    %180 = vst [vmem:[#allocation2 + $0x8] sm:$0xff] %v172
    %181 = vst [vmem:[#allocation2 + $0x10] sm:$0xff] %v173
    %182 = vst [vmem:[#allocation2 + $0x18] sm:$0xff] %v174
    %183 = vst [vmem:[#allocation2 + $0x20] sm:$0xff] %v175
    %184 = vst [vmem:[#allocation2 + $0x28] sm:$0xff] %v176
    %185 = vst [vmem:[#allocation2 + $0x30] sm:$0xff] %v177
    %186 = vst [vmem:[#allocation2 + $0x38] sm:$0xff] %v178
    // Predicated region
    $region26: #{tpu_custom_call.1} parent=1 // pred_check
      %p187 = pneg %p44
    $region27: #{tpu_custom_call.1} parent=1 // pred_check_branch
      %189 = sbr.rel (%p187) target = $region29
    $region28: #{tpu_custom_call.1} parent=1 // pred_region
      %v190 = vld [vmem:[#allocation2] sm:$0xff]
      %v191 = vld [vmem:[#allocation2 + $0x8] sm:$0xff]
      %v192 = vld [vmem:[#allocation2 + $0x10] sm:$0xff]
      %v193 = vld [vmem:[#allocation2 + $0x18] sm:$0xff]
      %v194 = vld [vmem:[#allocation2 + $0x20] sm:$0xff]
      %v195 = vld [vmem:[#allocation2 + $0x28] sm:$0xff]
      %v196 = vld [vmem:[#allocation2 + $0x30] sm:$0xff]
      %v197 = vld [vmem:[#allocation2 + $0x38] sm:$0xff]
      %v198 = vld [vmem:[%s2] sm:$0x3]
      %v200 = vlaneseq
      %v201 = vshrl.u32 %v200, 7
      %v202 = vsub.s32 0, %v201
      %v203 = vrot.slane %v198, %v202
      %v204 = vlaneseq
      %v205 = vshrl.u32 %v204, 7
      %v206 = vsub.s32 1, %v205
      %v207 = vrot.slane %v198, %v206
      %v210 = vadd.f32 %v190, %v203
      %v211 = vadd.f32 %v191, %v207
      %v212 = vadd.f32 %v192, %v203
      %v213 = vadd.f32 %v193, %v207
      %v214 = vadd.f32 %v194, %v203
      %v215 = vadd.f32 %v195, %v207
      %v216 = vadd.f32 %v196, %v203
      %v217 = vadd.f32 %v197, %v207
      %218 = vst [vmem:[#allocation8] sm:$0xff] %v210
      %219 = vst [vmem:[#allocation8 + $0x8] sm:$0xff] %v211
      %220 = vst [vmem:[#allocation8 + $0x10] sm:$0xff] %v212
      %221 = vst [vmem:[#allocation8 + $0x18] sm:$0xff] %v213
      %222 = vst [vmem:[#allocation8 + $0x20] sm:$0xff] %v214
      %223 = vst [vmem:[#allocation8 + $0x28] sm:$0xff] %v215
      %224 = vst [vmem:[#allocation8 + $0x30] sm:$0xff] %v216
      %225 = vst [vmem:[#allocation8 + $0x38] sm:$0xff] %v217
    $region29: #{tpu_custom_call.1} parent=1 // pred_fallthru
      _
    // Predicated region
    $region30: #{tpu_custom_call.1} parent=1 // pred_check
      _
    $region31: #{tpu_custom_call.1} parent=1 // pred_check_branch
      %227 = sbr.rel (0) target = $region33
    $region32: #{tpu_custom_call.1} parent=1 // pred_region
      %s229 = ssub.s32 1024, 1024
      %230 = vsyncadd [#allocation5], %s229
      %s231 = sshll.u32 [#allocation8], 4
      %s232 = int_to_ptr.vmem [resolvable:$true] %s231
      %237 = dma.vmem_to_hbm [thread:$0]  %s232, 1024, %s3, [#allocation5], 256, 256, 16
    $region33: #{tpu_custom_call.1} parent=1 // pred_fallthru
      _
    // Predicated region
    $region34: #{tpu_custom_call.1} parent=1 // pred_check
      _
    $region35: #{tpu_custom_call.1} parent=1 // pred_check_branch
      %239 = sbr.rel (0) target = $region37
    $region36: #{tpu_custom_call.1} parent=1 // pred_region
      %240 = dma.done [#allocation5], 1024
    $region37: #{tpu_custom_call.1} parent=1 // pred_fallthru
      _
    %241 = vsyncpa [#allocation4], 1
    %242 = vsyncpa [#allocation7], 1
    %243 = vsyncpa [#allocation5], 1

</llo_original>
